<compile_context>
chip_gen: v7x
topology: tpu7x:2x2x1
jax: 0.10.0
libtpu: 0.0.40
codegen_flags: <defaults>
</compile_context>

<pallas_src>
import numpy as np
import jax
import jax.numpy as jnp
from jax.experimental import pallas as pl
from jax.experimental.pallas import tpu as pltpu


def _round_up(x, m):
    return ((x + m - 1) // m) * m


def _mean_agg_kernel(mask_ref, inv_ref, embed_ref, out_ref):
    """grid = (B tiles, U tiles); axis 1 is the contraction (reduction) axis."""
    k = pl.program_id(1)

    @pl.when(k == 0)
    def _():
        out_ref[...] = jnp.zeros_like(out_ref)

    # bf16 x bf16 -> f32 accumulate on the MXU, directly into the resident output block.
    out_ref[...] += jnp.dot(mask_ref[...], embed_ref[...],
                            preferred_element_type=jnp.float32)

    @pl.when(k == pl.num_programs(1) - 1)
    def _():
        # Mean normalization with the host-computed 1/|N(i)| (single VPU multiply).
        out_ref[...] *= inv_ref[...]


def mean_aggregate_pallas(mask_np, inv_np, embed):
    """out = diag(inv) @ mask @ embed  (row-mean of sampled neighbor embeddings)."""
    B, U = mask_np.shape
    U_e, D = embed.shape
    assert U == U_e

    # --- tiling -----------------------------------------------------------
    TB = min(_round_up(B, 8), 256)          # batch (sublane / MXU-M) tile
    B_pad = _round_up(B, TB)
    D_pad = _round_up(D, 128)               # lane-dense output / MXU-N
    U_128 = _round_up(U, 128)

    # Contraction tile: as large as fits a v7x-safe budget (64 MiB phys, 32 MiB
    # scoped default); account for double-buffered inputs + the resident output.
    budget = 24 * 1024 * 1024

    def vmem_estimate(tu):
        return (2 * (TB * tu * 2 + tu * D_pad * 2)   # bf16 mask + embed, 2x buffered
                + TB * D_pad * 4                      # resident f32 output block
                + 2 * TB * 4)                         # inv-count column

    TU = 2048
    while TU > 128 and vmem_estimate(TU) > budget:
        TU //= 2
    if U_128 <= TU:
        TU = U_128                          # single contraction step for modest U
    U_pad = _round_up(U, TU)

    # --- host-side padding / dtype prep ------------------------------------
    mask_pad = np.zeros((B_pad, U_pad), np.float32)
    mask_pad[:B, :U] = mask_np                           # 0/1 -> exact in bf16
    inv_pad = np.zeros((B_pad, 1), np.float32)
    inv_pad[:B, 0] = inv_np
    embed_pad = jnp.zeros((U_pad, D_pad), jnp.bfloat16)
    embed_pad = embed_pad.at[:U, :D].set(embed.astype(jnp.bfloat16))

    grid = (B_pad // TB, U_pad // TU)
    out_pad = pl.pallas_call(
        _mean_agg_kernel,
        out_shape=jax.ShapeDtypeStruct((B_pad, D_pad), jnp.float32),
        grid_spec=pltpu.PrefetchScalarGridSpec(
            num_scalar_prefetch=0,
            grid=grid,
            in_specs=[
                pl.BlockSpec((TB, TU), lambda i, k: (i, k)),      # mask tile   (bf16)
                pl.BlockSpec((TB, 1), lambda i, k: (i, 0)),       # 1/count col (f32)
                pl.BlockSpec((TU, D_pad), lambda i, k: (k, 0)),   # embed tile  (bf16)
            ],
            out_specs=pl.BlockSpec((TB, D_pad), lambda i, k: (i, 0)),
        ),
        compiler_params=pltpu.CompilerParams(
            dimension_semantics=("parallel", "arbitrary"),
            vmem_limit_bytes=32 * 1024 * 1024),
    )(jnp.asarray(mask_pad, dtype=jnp.bfloat16),
      jnp.asarray(inv_pad),
      embed_pad)
    return out_pad[:B, :D]


def mean_aggregator_forward(features, nodes, to_neighs, num_sample=10,
                            gcn=False, first_layer=True, feature_dict=None,
                            rng=None):
    """Mirrors MeanAggregator.forward. `features` is an embedding table (N, D)."""
    del nodes, gcn  # nodes only define batch order via to_neighs; gcn unused in forward
    if rng is None:
        rng = np.random.RandomState(0)

    # --- host-side graph / set logic (Python sets & sampling; no Pallas equivalent) ---
    if num_sample is not None and first_layer:
        samp_neighs = [set(rng.choice(list(tn), num_sample).tolist()) for tn in to_neighs]
    else:
        samp_neighs = [set(list(tn)) for tn in to_neighs]
    unique_nodes_list = list(set.union(*samp_neighs))
    unique_nodes = {n: i for i, n in enumerate(unique_nodes_list)}

    mask = np.zeros((len(samp_neighs), len(unique_nodes)), np.float32)
    column_indices = [unique_nodes[n] for sn in samp_neighs for n in sn]
    row_indices = [i for i in range(len(samp_neighs)) for _ in samp_neighs[i]]
    mask[row_indices, column_indices] = 1.0

    # Row counts are already known on the host -> pre-compute 1/|N(i)| (mean weights).
    counts = np.array([len(sn) for sn in samp_neighs], np.float32)
    # TODO(synk): the torch reference divides by zero (NaN) for empty neighbor sets;
    # here such rows produce 0 instead.
    inv = np.where(counts > 0, 1.0 / np.maximum(counts, 1.0), 0.0).astype(np.float32)

    # Embedding lookup (glue): features(LongTensor(unique_nodes_list))
    if first_layer:
        idx = np.asarray(unique_nodes_list, dtype=np.int32)
    else:
        idx = np.asarray([feature_dict[v] for v in unique_nodes_list], dtype=np.int32)
    embed_matrix = jnp.take(features, jnp.asarray(idx), axis=0)

    # --- hot path in Pallas: mean-normalized masked matmul ---
    # TODO(synk): for very large unique-neighbor counts, a scalar-prefetched row
    # gather of only the <= num_sample sampled rows per batch node (O(B*S*D))
    # would beat the dense (B,U)@(U,D) formulation used here.
    return mean_aggregate_pallas(mask, inv, embed_matrix), mask, embed_matrix


if __name__ == "__main__":
    key = jax.random.PRNGKey(0)

    N_total, D = 40, 32   # total graph nodes, hidden/feature dim
    B = 8                 # batch of nodes
    num_sample = 10

    # Deterministic embedding table (stand-in for the `features` callable).
    feat_table = jax.random.normal(key, (N_total, D), dtype=jnp.float32)

    # Deterministic synthetic neighbor sets.
    rng = np.random.RandomState(0)
    to_neighs = [set(rng.choice(N_total, size=6, replace=False).tolist()) for _ in range(B)]
    nodes = list(range(B))

    out, mask_np, embed = mean_aggregator_forward(
        feat_table, nodes, to_neighs, num_sample=num_sample,
        gcn=False, first_layer=True, rng=np.random.RandomState(0))
    out = jax.block_until_ready(out)

    # Reference in plain numpy, using the bf16-rounded embed the kernel consumed
    # (mask is 0/1 so it is exact in bf16; accumulation in the kernel is f32).
    embed_bf16 = np.asarray(embed.astype(jnp.bfloat16).astype(jnp.float32))
    counts = mask_np.sum(axis=1, keepdims=True)
    ref = (mask_np / counts) @ embed_bf16
    np.testing.assert_allclose(np.asarray(out), ref, rtol=1e-3, atol=1e-3)

    print("KERNEL_OK")
</pallas_src>

<mosaic_0001>
module attributes {stable_mosaic.version = 11 : i64} {
  func.func @_mean_agg_kernel(%arg0: i32, %arg1: i32, %arg2: memref<8x128xbf16, #tpu.memory_space<vmem>>, %arg3: memref<8x1xf32, #tpu.memory_space<vmem>>, %arg4: memref<128x128xbf16, #tpu.memory_space<vmem>>, %arg5: memref<8x128xf32, #tpu.memory_space<vmem>>) attributes {dimension_semantics = [#tpu.dimension_semantics<parallel>, #tpu.dimension_semantics<arbitrary>], iteration_bounds = array<i64: 1, 1>, scalar_prefetch = 0 : i64, scratch_operands = 0 : i64, tpu.core_type = #tpu.core_type<tc>, window_params = [{transform_indices = @transform_0, window_bounds = array<i64: 8, 128>}, {transform_indices = @transform_1, window_bounds = array<i64: 8, 1>}, {transform_indices = @transform_2, window_bounds = array<i64: 128, 128>}, {transform_indices = @transform_3, window_bounds = array<i64: 8, 128>}]} {
    %c0_i32 = arith.constant 0 : i32
    %0 = arith.cmpi eq, %arg1, %c0_i32 : i32
    %1 = arith.extui %0 : i1 to i32
    %c0_i32_0 = arith.constant 0 : i32
    %2 = arith.cmpi ne, %1, %c0_i32_0 : i32
    scf.if %2 {
      %cst_10 = arith.constant 0.000000e+00 : f32
      %12 = vector.broadcast %cst_10 : f32 to vector<8x128xf32>
      %c0_11 = arith.constant 0 : index
      %c0_12 = arith.constant 0 : index
      %13 = vector.load %arg5[%c0_11, %c0_12] : memref<8x128xf32, #tpu.memory_space<vmem>>, vector<8x128xf32>
      tpu.vector_store %arg5[%c0_11, %c0_12], %12 {strides = array<i32>} : memref<8x128xf32, #tpu.memory_space<vmem>>, vector<8x128xf32>,
    } else {
    }
    %c0 = arith.constant 0 : index
    %c0_1 = arith.constant 0 : index
    %3 = vector.load %arg5[%c0, %c0_1] : memref<8x128xf32, #tpu.memory_space<vmem>>, vector<8x128xf32>
    %c0_2 = arith.constant 0 : index
    %c0_3 = arith.constant 0 : index
    %4 = vector.load %arg2[%c0_2, %c0_3] : memref<8x128xbf16, #tpu.memory_space<vmem>>, vector<8x128xbf16>
    %c0_4 = arith.constant 0 : index
    %c0_5 = arith.constant 0 : index
    %5 = vector.load %arg4[%c0_4, %c0_5] : memref<128x128xbf16, #tpu.memory_space<vmem>>, vector<128x128xbf16>
    %cst = arith.constant dense<0.000000e+00> : vector<8x128xf32>
    %6 = tpu.matmul %4, %5, %cst {dimension_numbers = #tpu.dot_dimension_numbers<[1], [0], [0], [1], [0, 0, 1, 1], [], []>} : vector<8x128xbf16>, vector<128x128xbf16>, vector<8x128xf32> -> vector<8x128xf32>
    %7 = arith.addf %3, %6 : vector<8x128xf32>
    %c0_6 = arith.constant 0 : index
    %c0_7 = arith.constant 0 : index
    %8 = vector.load %arg5[%c0_6, %c0_7] : memref<8x128xf32, #tpu.memory_space<vmem>>, vector<8x128xf32>
    tpu.vector_store %arg5[%c0_6, %c0_7], %7 {strides = array<i32>} : memref<8x128xf32, #tpu.memory_space<vmem>>, vector<8x128xf32>,
    %c0_i32_8 = arith.constant 0 : i32
    %9 = arith.cmpi eq, %arg1, %c0_i32_8 : i32
    %10 = arith.extui %9 : i1 to i32
    %c0_i32_9 = arith.constant 0 : i32
    %11 = arith.cmpi ne, %10, %c0_i32_9 : i32
    scf.if %11 {
      %c0_10 = arith.constant 0 : index
      %c0_11 = arith.constant 0 : index
      %12 = vector.load %arg5[%c0_10, %c0_11] : memref<8x128xf32, #tpu.memory_space<vmem>>, vector<8x128xf32>
      %c0_12 = arith.constant 0 : index
      %c0_13 = arith.constant 0 : index
      %13 = vector.load %arg3[%c0_12, %c0_13] : memref<8x1xf32, #tpu.memory_space<vmem>>, vector<8x1xf32>
      %14 = vector.broadcast %13 : vector<8x1xf32> to vector<8x128xf32>
      %15 = arith.mulf %12, %14 : vector<8x128xf32>
      %c0_14 = arith.constant 0 : index
      %c0_15 = arith.constant 0 : index
      %16 = vector.load %arg5[%c0_14, %c0_15] : memref<8x128xf32, #tpu.memory_space<vmem>>, vector<8x128xf32>
      tpu.vector_store %arg5[%c0_14, %c0_15], %15 {strides = array<i32>} : memref<8x128xf32, #tpu.memory_space<vmem>>, vector<8x128xf32>,
    } else {
    }
    return
  }
  func.func @transform_0(%arg0: i32, %arg1: i32) -> (i32, i32) {
    %c0_i32 = arith.constant 0 : i32
    return %arg0, %arg1 : i32, i32
  }
  func.func @transform_1(%arg0: i32, %arg1: i32) -> (i32, i32) {
    %c0_i32 = arith.constant 0 : i32
    %c0_i32_0 = arith.constant 0 : i32
    return %arg0, %c0_i32 : i32, i32
  }
  func.func @transform_2(%arg0: i32, %arg1: i32) -> (i32, i32) {
    %c0_i32 = arith.constant 0 : i32
    %c0_i32_0 = arith.constant 0 : i32
    return %arg1, %c0_i32 : i32, i32
  }
  func.func @transform_3(%arg0: i32, %arg1: i32) -> (i32, i32) {
    %c0_i32 = arith.constant 0 : i32
    %c0_i32_0 = arith.constant 0 : i32
    return %arg0, %c0_i32 : i32, i32
  }
}

</mosaic_0001>

<llo_original>
// kernel: tpu_custom_call.1
$region0: #{tpu_custom_call.1}
  #allocation0 [shape = 'u32[]', space=smem, size = 0x4, offset = 0x4, fixed_abs, tag = 'smem constant byte address 0x4 - core index']
  #allocation1 [shape = 'u32[144,128]{1,0:T(1,128)}', space=vmem, size = 0x12000, scoped, tag = 'internal scratch']
  %s0 = inlined_call_operand.vmem [shape: bf16[8,128], index: 0, kind: input, shape index: {}]
  %s1 = inlined_call_operand.vmem [shape: f32[8,1], index: 1, kind: input, shape index: {}]
  %s2 = inlined_call_operand.hbm [shape: bf16[128,128], index: 2, kind: input, shape index: {}]
  %s3 = inlined_call_operand.hbm [shape: f32[8,128], index: 3, kind: output, shape index: {}]
  %s4 = sld [smem:[#allocation0]]
  $region34: #{tpu_custom_call.1} parent=0
    _
  %s6 = ssub.s32 1, %s4
  %s7 = scalar_select 0, %s6, %s4
  $region1: #{tpu_custom_call.1} parent=0
    #allocation2 [shape = 'u8[32768]{0}', space=vmem, size = 0x8000, scoped, tag = 'input window, operand 2, single buffered']
    #allocation3 [shape = 's32[1]{0}', space=sflag, size = 0x4, scoped, tag = 'scoped memory for tpu_custom_call.1']
    #allocation4 [shape = 's32[1]{0}', space=sflag, size = 0x4, scoped, tag = 'scoped memory for tpu_custom_call.1']
    #allocation5 [shape = 'u8[4096]{0}', space=vmem, size = 0x1000, scoped, tag = 'output window, operand 0, single buffered']
    %8 = vsyncpa [#allocation3], 0
    %9 = vsyncpa [#allocation4], 0
    // Predicated region
    $region2: #{tpu_custom_call.1} parent=1 // pred_check
      _
    $region3: #{tpu_custom_call.1} parent=1 // pred_check_branch
      %11 = sbr.rel (0) target = $region5
    $region4: #{tpu_custom_call.1} parent=1 // pred_region
      _
    $region5: #{tpu_custom_call.1} parent=1 // pred_fallthru
      _
    // Predicated region
    $region6: #{tpu_custom_call.1} parent=1 // pred_check
      _
    $region7: #{tpu_custom_call.1} parent=1 // pred_check_branch
      %13 = sbr.rel (0) target = $region9
    $region8: #{tpu_custom_call.1} parent=1 // pred_region
      _
    $region9: #{tpu_custom_call.1} parent=1 // pred_fallthru
      _
    // Predicated region
    $region10: #{tpu_custom_call.1} parent=1 // pred_check
      _
    $region11: #{tpu_custom_call.1} parent=1 // pred_check_branch
      %15 = sbr.rel (0) target = $region13
    $region12: #{tpu_custom_call.1} parent=1 // pred_region
      %s17 = ssub.s32 1024, 1024
      %18 = vsyncadd [#allocation3], %s17
      %s19 = sshll.u32 [#allocation2], 4
      %s20 = int_to_ptr.vmem [resolvable:$true] %s19
      %25 = dma.hbm_to_vmem [thread:$0]  %s2, 1024, %s20, [#allocation3], 64, 64, 4
    $region13: #{tpu_custom_call.1} parent=1 // pred_fallthru
      _
    // Predicated region
    $region14: #{tpu_custom_call.1} parent=1 // pred_check
      _
    $region15: #{tpu_custom_call.1} parent=1 // pred_check_branch
      %27 = sbr.rel (0) target = $region17
    $region16: #{tpu_custom_call.1} parent=1 // pred_region
      %28 = dma.done [#allocation3], 1024
    $region17: #{tpu_custom_call.1} parent=1 // pred_fallthru
      _
    %p30 = scmp.eq.s32.totalorder 0, 0
    // Predicated region
    $region18: #{tpu_custom_call.1} parent=1 // pred_check
      %p31 = pneg %p30
    $region19: #{tpu_custom_call.1} parent=1 // pred_check_branch
      %33 = sbr.rel (%p31) target = $region21
    $region20: #{tpu_custom_call.1} parent=1 // pred_region
      %34 = vst [vmem:[#allocation5] sm:$0xff] 0.0
    $region21: #{tpu_custom_call.1} parent=1 // pred_fallthru
      _
    %v35 = vld [vmem:[#allocation5] sm:$0xff]
    %v36 = vld [vmem:[%s0] sm:$0xf]
    %v37 = vld [vmem:[#allocation2] sm:$0xf]
    %v38 = vld [vmem:[#allocation2 + $0x4] sm:$0xf]
    %v39 = vld [vmem:[#allocation2 + $0x8] sm:$0xf]
    %v40 = vld [vmem:[#allocation2 + $0xc] sm:$0xf]
    %v41 = vld [vmem:[#allocation2 + $0x10] sm:$0xf]
    %v42 = vld [vmem:[#allocation2 + $0x14] sm:$0xf]
    %v43 = vld [vmem:[#allocation2 + $0x18] sm:$0xf]
    %v44 = vld [vmem:[#allocation2 + $0x1c] sm:$0xf]
    %v45 = vld [vmem:[#allocation2 + $0x20] sm:$0xf]
    %v46 = vld [vmem:[#allocation2 + $0x24] sm:$0xf]
    %v47 = vld [vmem:[#allocation2 + $0x28] sm:$0xf]
    %v48 = vld [vmem:[#allocation2 + $0x2c] sm:$0xf]
    %v49 = vld [vmem:[#allocation2 + $0x30] sm:$0xf]
    %v50 = vld [vmem:[#allocation2 + $0x34] sm:$0xf]
    %v51 = vld [vmem:[#allocation2 + $0x38] sm:$0xf]
    %v52 = vld [vmem:[#allocation2 + $0x3c] sm:$0xf]
    %v69 = vunpack.c.l.b16 %v37
    %v70 = vunpack.c.l.b16 %v38
    %v71 = vunpack.c.l.b16 %v39
    %v72 = vunpack.c.l.b16 %v40
    %v73 = vunpack.c.l.b16 %v41
    %v74 = vunpack.c.l.b16 %v42
    %v75 = vunpack.c.l.b16 %v43
    %v76 = vunpack.c.l.b16 %v44
    %v77 = vunpack.c.l.b16 %v45
    %v78 = vunpack.c.l.b16 %v46
    %v79 = vunpack.c.l.b16 %v47
    %v80 = vunpack.c.l.b16 %v48
    %v81 = vunpack.c.l.b16 %v49
    %v82 = vunpack.c.l.b16 %v50
    %v83 = vunpack.c.l.b16 %v51
    %v84 = vunpack.c.l.b16 %v52
    %v85 = vpack.c.b16 %v70, %v69
    %v86 = vpack.c.b16 %v72, %v71
    %v87 = vpack.c.b16 %v74, %v73
    %v88 = vpack.c.b16 %v76, %v75
    %v89 = vpack.c.b16 %v78, %v77
    %v90 = vpack.c.b16 %v80, %v79
    %v91 = vpack.c.b16 %v82, %v81
    %v92 = vpack.c.b16 %v84, %v83
    %101 = vmatprep.subr.bf16.mxu0 0
    %102 = vmatpush1.bf16.msra.mxu0 %v85
    %103 = vmatprep.subr.bf16.mxu0 0
    %104 = vmatpush1.bf16.msra.mxu0 %v86
    %105 = vmatprep.subr.bf16.mxu0 0
    %106 = vmatpush1.bf16.msra.mxu0 %v87
    %107 = vmatprep.subr.bf16.mxu0 0
    %108 = vmatpush1.bf16.msra.mxu0 %v88
    %109 = vmatprep.subr.bf16.mxu0 0
    %110 = vmatpush1.bf16.msra.mxu0 %v89
    %111 = vmatprep.subr.bf16.mxu0 0
    %112 = vmatpush1.bf16.msra.mxu0 %v90
    %113 = vmatprep.subr.bf16.mxu0 0
    %114 = vmatpush1.bf16.msra.mxu0 %v91
    %115 = vmatprep.subr.bf16.mxu0 0
    %116 = vmatpush1.bf16.msra.mxu0 %v92
    %117 = vmatprep.subr.bf16.mxu0 0
    %118 = vmatpush1.bf16.msra.mxu0 0
    %119 = vmatprep.subr.bf16.mxu0 0
    %120 = vmatpush1.bf16.msra.mxu0 0
    %121 = vmatprep.subr.bf16.mxu0 0
    %122 = vmatpush1.bf16.msra.mxu0 0
    %123 = vmatprep.subr.bf16.mxu0 0
    %124 = vmatpush1.bf16.msra.mxu0 0
    %125 = vmatprep.subr.bf16.mxu0 0
    %126 = vmatpush1.bf16.msra.mxu0 0
    %127 = vmatprep.subr.bf16.mxu0 0
    %128 = vmatpush1.bf16.msra.mxu0 0
    %129 = vmatprep.subr.bf16.mxu0 0
    %130 = vmatpush1.bf16.msra.mxu0 0
    %131 = vmatprep.subr.bf16.mxu0 0
    %132 = vmatpush1.bf16.msra.mxu0 0
    %133 = vmatprep.mubr.bf16.mxu0 0
    %134 = vmatmul.mubr.bf16.gmra.mrb[0].mxu0 %v36
    %v135 = vpop.f32.mrb[0].mxu0
    %v136 = vadd.f32 0.0, %v135
    %v137 = vpop.f32.mrb[0].mxu0
    %v138 = vpop.f32.mrb[0].mxu0
    %v139 = vpop.f32.mrb[0].mxu0
    %140 = vdwg.mxu0
    %v141 = vadd.f32 %v35, %v136
    %142 = vst [vmem:[#allocation5] sm:$0xff] %v141
    // Predicated region
    $region22: #{tpu_custom_call.1} parent=1 // pred_check
      %p143 = pneg %p30
    $region23: #{tpu_custom_call.1} parent=1 // pred_check_branch
      %145 = sbr.rel (%p143) target = $region25
    $region24: #{tpu_custom_call.1} parent=1 // pred_region
      %v146 = vld [vmem:[#allocation5] sm:$0xff]
      %v147 = vld [vmem:[%s1] sm:$0xff]
      %149 = vset.pattern.permute.xlu0 0
      %150 = vperm.xlu0 %149, %v147
      %v151 = vpop.permute.xlu0 %150
      %v153 = vmul.f32 %v146, %v151
      %154 = vst [vmem:[#allocation5] sm:$0xff] %v153
    $region25: #{tpu_custom_call.1} parent=1 // pred_fallthru
      _
    // Predicated region
    $region26: #{tpu_custom_call.1} parent=1 // pred_check
      _
    $region27: #{tpu_custom_call.1} parent=1 // pred_check_branch
      %156 = sbr.rel (0) target = $region29
    $region28: #{tpu_custom_call.1} parent=1 // pred_region
      %s158 = ssub.s32 128, 128
      %159 = vsyncadd [#allocation4], %s158
      %s161 = sshll.u32 [#allocation5], 4
      %s162 = int_to_ptr.vmem [resolvable:$true] %s161
      %164 = dma.vmem_to_hbm [thread:$0]  %s162, 128, %s3, [#allocation4]
    $region29: #{tpu_custom_call.1} parent=1 // pred_fallthru
      _
    // Predicated region
    $region30: #{tpu_custom_call.1} parent=1 // pred_check
      _
    $region31: #{tpu_custom_call.1} parent=1 // pred_check_branch
      %166 = sbr.rel (0) target = $region33
    $region32: #{tpu_custom_call.1} parent=1 // pred_region
      %167 = dma.done [#allocation4], 128
    $region33: #{tpu_custom_call.1} parent=1 // pred_fallthru
      _
    %168 = vsyncpa [#allocation3], 1
    %169 = vsyncpa [#allocation4], 1

</llo_original>
